<compile_context>
chip_gen: v5e
topology: v5e:2x2
jax: 0.10.0
libtpu: 0.0.40
codegen_flags: <defaults>
</compile_context>

<pallas_src>
import jax
import jax.numpy as jnp
from jax.experimental import pallas as pl
from jax.experimental.pallas import tpu as pltpu

EPS = 1e-5  # PyTorch BatchNorm2d default eps


# --------------------------------------------------------------------------
# Pallas kernel: plain bf16 MXU matmul, f32 accumulate
# --------------------------------------------------------------------------
def _matmul_kernel(x_ref, w_ref, o_ref):
    o_ref[...] = jnp.dot(x_ref[...], w_ref[...],
                         preferred_element_type=jnp.float32)


def _choose_tiling(M, N):
    """Pick (tm, M_pad): tm multiple of 16, f32 result block <= ~128 KB,
    and >= 2 (ideally 4) grid steps so v7x megacore can shard the axis."""
    m16 = -(-M // 16) * 16
    cap = max(16, ((128 * 1024) // (4 * N)) // 16 * 16)   # result block <= 128 KB
    cap = min(cap, 512)
    if m16 <= 16:
        return m16, m16
    steps = 4 if m16 >= 64 else 2
    tm = -(-m16 // steps)            # ceil
    tm = -(-tm // 16) * 16           # round up to multiple of 16
    tm = min(tm, cap)
    m_pad = -(-m16 // tm) * tm
    return tm, m_pad


def pallas_matmul(x_bf16, w_bf16):
    """(M, K) bf16 @ (K, N) bf16 -> (M, N) f32 via a tiled Pallas MXU kernel."""
    M, K = x_bf16.shape
    _, N = w_bf16.shape
    tm, m_pad = _choose_tiling(M, N)
    if m_pad != M:
        x_bf16 = jnp.pad(x_bf16, ((0, m_pad - M), (0, 0)))
    out = pl.pallas_call(
        _matmul_kernel,
        out_shape=jax.ShapeDtypeStruct((m_pad, N), jnp.float32),
        grid=(m_pad // tm,),
        in_specs=[
            pl.BlockSpec((tm, K), lambda i: (i, 0)),
            pl.BlockSpec((K, N), lambda i: (0, 0)),
        ],
        out_specs=pl.BlockSpec((tm, N), lambda i: (i, 0)),
        compiler_params=pltpu.CompilerParams(
            dimension_semantics=("parallel",),
            vmem_limit_bytes=32 * 1024 * 1024),
    )(x_bf16, w_bf16)
    return out[:M] if m_pad != M else out


# --------------------------------------------------------------------------
# Weight preparation (hoisted once; not re-emitted per forward)
# --------------------------------------------------------------------------
def _pad_lanes(wm):
    n = wm.shape[1]
    n_pad = -(-n // 128) * 128
    if n < n_pad:
        wm = jnp.pad(wm, ((0, 0), (0, n_pad - n)))
    return wm.astype(jnp.bfloat16)


def _wmat1(w_t):
    """Layer 1 (k4 s1 p0, 1x1 input): (Cin,Cout,4,4) -> (Cin, 16*Cout),
    columns ordered (ky, kx, co) so col2im is a pure reshape."""
    cin, cout, kh, kw = w_t.shape
    wm = jnp.transpose(w_t, (0, 2, 3, 1)).reshape(cin, kh * kw * cout)
    return _pad_lanes(wm)


def _w_parity(w_t):
    """Stride-2 layers: output-parity weight matrix (4*Cin, 4*Cout) with rows
    ordered (dy, dx, ci) and columns (py, px, co), where for output parity
    (py,px) and window offset (dy,dx):  ky = 3 - py - 2*dy, kx = 3 - px - 2*dx."""
    cin, cout, kh, kw = w_t.shape
    assert kh == 4 and kw == 4
    w_rev = w_t[:, :, ::-1, ::-1].reshape(cin, cout, 2, 2, 2, 2)  # (ci,co,dy,py,dx,px)
    wm = jnp.transpose(w_rev, (2, 4, 0, 3, 5, 1)).reshape(4 * cin, 4 * cout)
    return _pad_lanes(wm)


def prepare_params(params):
    return {
        "w1": _wmat1(params["w1"]),
        "w2": _w_parity(params["w2"]),
        "w3": _w_parity(params["w3"]),
        "w4": _w_parity(params["w4"]),
        "g1": params["g1"], "b1": params["b1"],
        "g2": params["g2"], "b2": params["b2"],
        "g3": params["g3"], "b3": params["b3"],
    }


# --------------------------------------------------------------------------
# Glue (fused by XLA): BN batch stats + ReLU, im2col, parity interleave
# --------------------------------------------------------------------------
def _bn_relu(y, gamma, beta):
    """Training-mode BatchNorm2d (batch stats, biased var) + ReLU, all in f32."""
    mean = jnp.mean(y, axis=(0, 1, 2))
    var = jnp.mean(jnp.square(y - mean), axis=(0, 1, 2))   # mean-subtracted (stable)
    scale = gamma * jax.lax.rsqrt(var + EPS)
    shift = beta - mean * scale
    return jnp.maximum(y * scale + shift, 0.0)


def deconv_s2_p1(x_act, wm, cout):
    """ConvTranspose2d(k=4, s=2, p=1) as a single output-parity Pallas matmul.

    x_act: (B, H, W, Cin) post-activation (so zero-padding = zero contribution).
    Returns (B, 2H, 2W, cout) in f32.  No scatter-adds: 4 static slices + one
    interleaving reshape after the matmul."""
    B, H, W, cin = x_act.shape
    xb = x_act.astype(jnp.bfloat16)
    xp = jnp.pad(xb, ((0, 0), (1, 1), (1, 1), (0, 0)))
    cols = jnp.stack([xp[:, dy:dy + H + 1, dx:dx + W + 1, :]
                      for dy in (0, 1) for dx in (0, 1)], axis=3)   # (B,H+1,W+1,4,Cin)
    xcol = cols.reshape(B * (H + 1) * (W + 1), 4 * cin)

    p = pallas_matmul(xcol, wm)                                     # (M, Npad) f32

    y = p[:, :4 * cout].reshape(B, H + 1, W + 1, 2, 2, cout)
    parts = [[y[:, py:py + H, px:px + W, py, px, :] for px in (0, 1)]
             for py in (0, 1)]
    out = jnp.stack([jnp.stack(parts[py], axis=3) for py in (0, 1)], axis=2)
    return out.reshape(B, 2 * H, 2 * W, cout)                       # (B,2H,2W,cout)


def dc_generator_forward(z, prep):
    """z: (B, noise_size, 1, 1) NCHW -> (B, 3, 32, 32) NCHW."""
    B = z.shape[0]
    c1 = prep["g1"].shape[0]
    c2 = prep["g2"].shape[0]
    c3 = prep["g3"].shape[0]

    # 1x1 spatial input -> flat (B, noise); no affine for layer 1 (no preceding BN)
    x = z.reshape(B, -1).astype(jnp.bfloat16)

    # deconv1 (k4 s1 p0): col2im is a pure reshape
    p1 = pallas_matmul(x, prep["w1"])
    y1 = p1[:, :16 * c1].reshape(B, 4, 4, c1)
    a1 = _bn_relu(y1, prep["g1"], prep["b1"])

    # deconv2 (k4 s2 p1) + BN2 + ReLU
    y2 = deconv_s2_p1(a1, prep["w2"], c2)
    a2 = _bn_relu(y2, prep["g2"], prep["b2"])

    # deconv3 (k4 s2 p1) + BN3 + ReLU
    y3 = deconv_s2_p1(a2, prep["w3"], c3)
    a3 = _bn_relu(y3, prep["g3"], prep["b3"])

    # deconv4 (k4 s2 p1), no BN; tanh AFTER the parity interleave (sum of taps)
    y4 = deconv_s2_p1(a3, prep["w4"], 3)
    out = jnp.tanh(y4)

    # single NHWC -> NCHW conversion at the output boundary
    return jnp.transpose(out, (0, 3, 1, 2))


# ------------------------- pure-JAX reference (for self-check) ----------------
def _ref_deconv(x, w_t, stride, pad):
    w_conv = jnp.flip(w_t, (2, 3)).transpose(1, 0, 2, 3)  # OIHW
    return jax.lax.conv_general_dilated(
        x, w_conv, window_strides=(1, 1),
        padding=[(3 - pad, 3 - pad)] * 2,
        lhs_dilation=(stride, stride),
        dimension_numbers=("NCHW", "OIHW", "NCHW"))


def _ref_forward(z, params):
    def bn(y, g, b):
        m = y.mean(axis=(0, 2, 3), keepdims=True)
        v = jnp.square(y - m).mean(axis=(0, 2, 3), keepdims=True)
        return (y - m) * jax.lax.rsqrt(v + EPS) * g.reshape(1, -1, 1, 1) \
            + b.reshape(1, -1, 1, 1)

    y = jax.nn.relu(bn(_ref_deconv(z, params["w1"], 1, 0), params["g1"], params["b1"]))
    y = jax.nn.relu(bn(_ref_deconv(y, params["w2"], 2, 1), params["g2"], params["b2"]))
    y = jax.nn.relu(bn(_ref_deconv(y, params["w3"], 2, 1), params["g3"], params["b3"]))
    y = jnp.tanh(_ref_deconv(y, params["w4"], 2, 1))
    return y


if __name__ == "__main__":
    # Small shapes consistent with the module: noise_size=32, conv_dim=16, B=2.
    noise_size, conv_dim, B = 32, 16, 2
    key = jax.random.PRNGKey(0)
    ks = jax.random.split(key, 11)

    def winit(k, shape):
        return (0.05 * jax.random.normal(k, shape)).astype(jnp.float32)

    params = {
        # ConvTranspose2d weights: (in_channels, out_channels, kH, kW), bias=False
        "w1": winit(ks[0], (noise_size, 4 * conv_dim, 4, 4)),
        "w2": winit(ks[1], (4 * conv_dim, 2 * conv_dim, 4, 4)),
        "w3": winit(ks[2], (2 * conv_dim, conv_dim, 4, 4)),
        "w4": winit(ks[3], (conv_dim, 3, 4, 4)),
        # BatchNorm2d affine params (deterministic, non-trivial)
        "g1": (1.0 + 0.1 * jax.random.normal(ks[4], (4 * conv_dim,))).astype(jnp.float32),
        "b1": (0.05 * jax.random.normal(ks[5], (4 * conv_dim,))).astype(jnp.float32),
        "g2": (1.0 + 0.1 * jax.random.normal(ks[6], (2 * conv_dim,))).astype(jnp.float32),
        "b2": (0.05 * jax.random.normal(ks[7], (2 * conv_dim,))).astype(jnp.float32),
        "g3": (1.0 + 0.1 * jax.random.normal(ks[8], (conv_dim,))).astype(jnp.float32),
        "b3": (0.05 * jax.random.normal(ks[9], (conv_dim,))).astype(jnp.float32),
    }
    # TODO(synk): BatchNorm running-stat (momentum) buffer updates are not
    # modeled; training-mode forward output does not depend on them.

    z = jax.random.normal(ks[10], (B, noise_size, 1, 1), dtype=jnp.float32)

    prep = prepare_params(params)            # hoisted weight reshape + bf16 cast
    out = jax.jit(dc_generator_forward)(z, prep)
    out = jax.block_until_ready(out)
    assert out.shape == (B, 3, 32, 32), out.shape

    ref = _ref_forward(z, params)
    err = float(jnp.abs(out - ref).max())
    # bf16 MXU operands (f32 accumulate) vs f32 reference -> loosened tolerance.
    assert jnp.allclose(out, ref, atol=3e-2, rtol=3e-2), err

    print("KERNEL_OK")
</pallas_src>

<mosaic_0001>
module attributes {stable_mosaic.version = 11 : i64} {
  func.func @_matmul_kernel(%arg0: i32, %arg1: memref<16x32xbf16, #tpu.memory_space<vmem>>, %arg2: memref<32x1024xbf16, #tpu.memory_space<vmem>>, %arg3: memref<16x1024xf32, #tpu.memory_space<vmem>>) attributes {dimension_semantics = [#tpu.dimension_semantics<parallel>], iteration_bounds = array<i64: 1>, scalar_prefetch = 0 : i64, scratch_operands = 0 : i64, tpu.core_type = #tpu.core_type<tc>, window_params = [{transform_indices = @transform_0, window_bounds = array<i64: 16, 32>}, {pipeline_mode = #tpu.pipeline_mode<synchronous>, transform_indices = @transform_1, window_bounds = array<i64: 32, 1024>}, {transform_indices = @transform_2, window_bounds = array<i64: 16, 1024>}]} {
    %c0 = arith.constant 0 : index
    %c0_0 = arith.constant 0 : index
    %0 = vector.load %arg1[%c0, %c0_0] : memref<16x32xbf16, #tpu.memory_space<vmem>>, vector<16x32xbf16>
    %c0_1 = arith.constant 0 : index
    %c0_2 = arith.constant 0 : index
    %1 = vector.load %arg2[%c0_1, %c0_2] : memref<32x1024xbf16, #tpu.memory_space<vmem>>, vector<32x1024xbf16>
    %cst = arith.constant dense<0.000000e+00> : vector<16x1024xf32>
    %2 = tpu.matmul %0, %1, %cst {dimension_numbers = #tpu.dot_dimension_numbers<[1], [0], [0], [1], [0, 0, 1, 1], [], []>} : vector<16x32xbf16>, vector<32x1024xbf16>, vector<16x1024xf32> -> vector<16x1024xf32>
    %c0_3 = arith.constant 0 : index
    %c0_4 = arith.constant 0 : index
    %3 = vector.load %arg3[%c0_3, %c0_4] : memref<16x1024xf32, #tpu.memory_space<vmem>>, vector<16x1024xf32>
    tpu.vector_store %arg3[%c0_3, %c0_4], %2 {strides = array<i32>} : memref<16x1024xf32, #tpu.memory_space<vmem>>, vector<16x1024xf32>,
    return
  }
  func.func @transform_0(%arg0: i32) -> (i32, i32) {
    %c0_i32 = arith.constant 0 : i32
    %c0_i32_0 = arith.constant 0 : i32
    return %arg0, %c0_i32 : i32, i32
  }
  func.func @transform_1(%arg0: i32) -> (i32, i32) {
    %c0_i32 = arith.constant 0 : i32
    %c0_i32_0 = arith.constant 0 : i32
    %c0_i32_1 = arith.constant 0 : i32
    return %c0_i32, %c0_i32_0 : i32, i32
  }
  func.func @transform_2(%arg0: i32) -> (i32, i32) {
    %c0_i32 = arith.constant 0 : i32
    %c0_i32_0 = arith.constant 0 : i32
    return %arg0, %c0_i32 : i32, i32
  }
}

module attributes {stable_mosaic.version = 11 : i64} {
  func.func @_matmul_kernel(%arg0: i32, %arg1: memref<16x256xbf16, #tpu.memory_space<vmem>>, %arg2: memref<256x128xbf16, #tpu.memory_space<vmem>>, %arg3: memref<16x128xf32, #tpu.memory_space<vmem>>) attributes {dimension_semantics = [#tpu.dimension_semantics<parallel>], iteration_bounds = array<i64: 4>, scalar_prefetch = 0 : i64, scratch_operands = 0 : i64, tpu.core_type = #tpu.core_type<tc>, window_params = [{transform_indices = @transform_0, window_bounds = array<i64: 16, 256>}, {pipeline_mode = #tpu.pipeline_mode<synchronous>, transform_indices = @transform_1, window_bounds = array<i64: 256, 128>}, {transform_indices = @transform_2, window_bounds = array<i64: 16, 128>}]} {
    %c0 = arith.constant 0 : index
    %c0_0 = arith.constant 0 : index
    %0 = vector.load %arg1[%c0, %c0_0] : memref<16x256xbf16, #tpu.memory_space<vmem>>, vector<16x256xbf16>
    %c0_1 = arith.constant 0 : index
    %c0_2 = arith.constant 0 : index
    %1 = vector.load %arg2[%c0_1, %c0_2] : memref<256x128xbf16, #tpu.memory_space<vmem>>, vector<256x128xbf16>
    %cst = arith.constant dense<0.000000e+00> : vector<16x128xf32>
    %2 = tpu.matmul %0, %1, %cst {dimension_numbers = #tpu.dot_dimension_numbers<[1], [0], [0], [1], [0, 0, 1, 1], [], []>} : vector<16x256xbf16>, vector<256x128xbf16>, vector<16x128xf32> -> vector<16x128xf32>
    %c0_3 = arith.constant 0 : index
    %c0_4 = arith.constant 0 : index
    %3 = vector.load %arg3[%c0_3, %c0_4] : memref<16x128xf32, #tpu.memory_space<vmem>>, vector<16x128xf32>
    tpu.vector_store %arg3[%c0_3, %c0_4], %2 {strides = array<i32>} : memref<16x128xf32, #tpu.memory_space<vmem>>, vector<16x128xf32>,
    return
  }
  func.func @transform_0(%arg0: i32) -> (i32, i32) {
    %c0_i32 = arith.constant 0 : i32
    %c0_i32_0 = arith.constant 0 : i32
    return %arg0, %c0_i32 : i32, i32
  }
  func.func @transform_1(%arg0: i32) -> (i32, i32) {
    %c0_i32 = arith.constant 0 : i32
    %c0_i32_0 = arith.constant 0 : i32
    %c0_i32_1 = arith.constant 0 : i32
    return %c0_i32, %c0_i32_0 : i32, i32
  }
  func.func @transform_2(%arg0: i32) -> (i32, i32) {
    %c0_i32 = arith.constant 0 : i32
    %c0_i32_0 = arith.constant 0 : i32
    return %arg0, %c0_i32 : i32, i32
  }
}

module attributes {stable_mosaic.version = 11 : i64} {
  func.func @_matmul_kernel(%arg0: i32, %arg1: memref<48x128xbf16, #tpu.memory_space<vmem>>, %arg2: memref<128x128xbf16, #tpu.memory_space<vmem>>, %arg3: memref<48x128xf32, #tpu.memory_space<vmem>>) attributes {dimension_semantics = [#tpu.dimension_semantics<parallel>], iteration_bounds = array<i64: 4>, scalar_prefetch = 0 : i64, scratch_operands = 0 : i64, tpu.core_type = #tpu.core_type<tc>, window_params = [{transform_indices = @transform_0, window_bounds = array<i64: 48, 128>}, {pipeline_mode = #tpu.pipeline_mode<synchronous>, transform_indices = @transform_1, window_bounds = array<i64: 128, 128>}, {transform_indices = @transform_2, window_bounds = array<i64: 48, 128>}]} {
    %c0 = arith.constant 0 : index
    %c0_0 = arith.constant 0 : index
    %0 = vector.load %arg1[%c0, %c0_0] : memref<48x128xbf16, #tpu.memory_space<vmem>>, vector<48x128xbf16>
    %c0_1 = arith.constant 0 : index
    %c0_2 = arith.constant 0 : index
    %1 = vector.load %arg2[%c0_1, %c0_2] : memref<128x128xbf16, #tpu.memory_space<vmem>>, vector<128x128xbf16>
    %cst = arith.constant dense<0.000000e+00> : vector<48x128xf32>
    %2 = tpu.matmul %0, %1, %cst {dimension_numbers = #tpu.dot_dimension_numbers<[1], [0], [0], [1], [0, 0, 1, 1], [], []>} : vector<48x128xbf16>, vector<128x128xbf16>, vector<48x128xf32> -> vector<48x128xf32>
    %c0_3 = arith.constant 0 : index
    %c0_4 = arith.constant 0 : index
    %3 = vector.load %arg3[%c0_3, %c0_4] : memref<48x128xf32, #tpu.memory_space<vmem>>, vector<48x128xf32>
    tpu.vector_store %arg3[%c0_3, %c0_4], %2 {strides = array<i32>} : memref<48x128xf32, #tpu.memory_space<vmem>>, vector<48x128xf32>,
    return
  }
  func.func @transform_0(%arg0: i32) -> (i32, i32) {
    %c0_i32 = arith.constant 0 : i32
    %c0_i32_0 = arith.constant 0 : i32
    return %arg0, %c0_i32 : i32, i32
  }
  func.func @transform_1(%arg0: i32) -> (i32, i32) {
    %c0_i32 = arith.constant 0 : i32
    %c0_i32_0 = arith.constant 0 : i32
    %c0_i32_1 = arith.constant 0 : i32
    return %c0_i32, %c0_i32_0 : i32, i32
  }
  func.func @transform_2(%arg0: i32) -> (i32, i32) {
    %c0_i32 = arith.constant 0 : i32
    %c0_i32_0 = arith.constant 0 : i32
    return %arg0, %c0_i32 : i32, i32
  }
}

module attributes {stable_mosaic.version = 11 : i64} {
  func.func @_matmul_kernel(%arg0: i32, %arg1: memref<160x64xbf16, #tpu.memory_space<vmem>>, %arg2: memref<64x128xbf16, #tpu.memory_space<vmem>>, %arg3: memref<160x128xf32, #tpu.memory_space<vmem>>) attributes {dimension_semantics = [#tpu.dimension_semantics<parallel>], iteration_bounds = array<i64: 4>, scalar_prefetch = 0 : i64, scratch_operands = 0 : i64, tpu.core_type = #tpu.core_type<tc>, window_params = [{transform_indices = @transform_0, window_bounds = array<i64: 160, 64>}, {pipeline_mode = #tpu.pipeline_mode<synchronous>, transform_indices = @transform_1, window_bounds = array<i64: 64, 128>}, {transform_indices = @transform_2, window_bounds = array<i64: 160, 128>}]} {
    %c0 = arith.constant 0 : index
    %c0_0 = arith.constant 0 : index
    %0 = vector.load %arg1[%c0, %c0_0] : memref<160x64xbf16, #tpu.memory_space<vmem>>, vector<160x64xbf16>
    %c0_1 = arith.constant 0 : index
    %c0_2 = arith.constant 0 : index
    %1 = vector.load %arg2[%c0_1, %c0_2] : memref<64x128xbf16, #tpu.memory_space<vmem>>, vector<64x128xbf16>
    %cst = arith.constant dense<0.000000e+00> : vector<160x128xf32>
    %2 = tpu.matmul %0, %1, %cst {dimension_numbers = #tpu.dot_dimension_numbers<[1], [0], [0], [1], [0, 0, 1, 1], [], []>} : vector<160x64xbf16>, vector<64x128xbf16>, vector<160x128xf32> -> vector<160x128xf32>
    %c0_3 = arith.constant 0 : index
    %c0_4 = arith.constant 0 : index
    %3 = vector.load %arg3[%c0_3, %c0_4] : memref<160x128xf32, #tpu.memory_space<vmem>>, vector<160x128xf32>
    tpu.vector_store %arg3[%c0_3, %c0_4], %2 {strides = array<i32>} : memref<160x128xf32, #tpu.memory_space<vmem>>, vector<160x128xf32>,
    return
  }
  func.func @transform_0(%arg0: i32) -> (i32, i32) {
    %c0_i32 = arith.constant 0 : i32
    %c0_i32_0 = arith.constant 0 : i32
    return %arg0, %c0_i32 : i32, i32
  }
  func.func @transform_1(%arg0: i32) -> (i32, i32) {
    %c0_i32 = arith.constant 0 : i32
    %c0_i32_0 = arith.constant 0 : i32
    %c0_i32_1 = arith.constant 0 : i32
    return %c0_i32, %c0_i32_0 : i32, i32
  }
  func.func @transform_2(%arg0: i32) -> (i32, i32) {
    %c0_i32 = arith.constant 0 : i32
    %c0_i32_0 = arith.constant 0 : i32
    return %arg0, %c0_i32 : i32, i32
  }
}

</mosaic_0001>

<llo_original>
// kernel: dc_generator_forward.4
$region0: #{dc_generator_forward.4}
  #allocation0 [shape = 'u32[]', space=smem, size = 0x4, offset = 0x4, fixed_abs, tag = 'smem constant byte address 0x4 - core index']
  #allocation1 [shape = 'u32[72,128]{1,0:T(1,128)}', space=vmem, size = 0x9000, scoped, tag = 'internal scratch']
  %s0 = inlined_call_operand.vmem [shape: bf16[16,32], index: 0, kind: input, shape index: {}]
  %s1 = inlined_call_operand.hbm [shape: bf16[32,1024], index: 1, kind: input, shape index: {}]
  %s2 = inlined_call_operand.vmem [shape: f32[16,1024], index: 2, kind: output, shape index: {}]
  %s3 = sld [smem:[#allocation0]]
  $region22: #{dc_generator_forward.4} parent=0
    _
  %s5 = ssub.s32 1, %s3
  %s6 = scalar_select 0, %s5, %s3
  $region1: #{dc_generator_forward.4} parent=0
    #allocation2 [shape = 'u8[65536]{0}', space=vmem, size = 0x10000, scoped, tag = 'input window, operand 1, single buffered']
    #allocation3 [shape = 's32[1]{0}', space=sflag, size = 0x4, scoped, tag = 'scoped memory for dc_generator_forward.4']
    %7 = vsyncpa [#allocation3], 0
    // Predicated region
    $region2: #{dc_generator_forward.4} parent=1 // pred_check
      _
    $region3: #{dc_generator_forward.4} parent=1 // pred_check_branch
      %9 = sbr.rel (0) target = $region5
    $region4: #{dc_generator_forward.4} parent=1 // pred_region
      _
    $region5: #{dc_generator_forward.4} parent=1 // pred_fallthru
      _
    // Predicated region
    $region6: #{dc_generator_forward.4} parent=1 // pred_check
      _
    $region7: #{dc_generator_forward.4} parent=1 // pred_check_branch
      %11 = sbr.rel (0) target = $region9
    $region8: #{dc_generator_forward.4} parent=1 // pred_region
      %13 = vsyncadd [#allocation3], 0
      %s14 = sshll.u32 %s1, 4
      %s15 = int_to_ptr.hbm [resolvable:$true] %s14
      %s16 = sshll.u32 [#allocation2], 4
      %s17 = int_to_ptr.vmem [resolvable:$true] %s16
      %22 = dma.hbm_to_vmem [thread:$0]  %s15, 2048, %s17, [#allocation3], 512, 512, 32
    $region9: #{dc_generator_forward.4} parent=1 // pred_fallthru
      _
    // Predicated region
    $region10: #{dc_generator_forward.4} parent=1 // pred_check
      _
    $region11: #{dc_generator_forward.4} parent=1 // pred_check_branch
      %24 = sbr.rel (0) target = $region13
    $region12: #{dc_generator_forward.4} parent=1 // pred_region
      %26 = dma.done [#allocation3], 2048
    $region13: #{dc_generator_forward.4} parent=1 // pred_fallthru
      _
    %v28 = vld [vmem:[%s0] sm:$0xf]
    %v29 = vld [vmem:[%s0 + $0x4] sm:$0xf]
    %v30 = vld [vmem:[#allocation2] sm:$0xff]
    %v31 = vld [vmem:[#allocation2 + $0x8] sm:$0xff]
    %v32 = vld [vmem:[#allocation2 + $0x10] sm:$0xff]
    %v33 = vld [vmem:[#allocation2 + $0x18] sm:$0xff]
    %v34 = vld [vmem:[#allocation2 + $0x20] sm:$0xff]
    %v35 = vld [vmem:[#allocation2 + $0x28] sm:$0xff]
    %v36 = vld [vmem:[#allocation2 + $0x30] sm:$0xff]
    %v37 = vld [vmem:[#allocation2 + $0x38] sm:$0xff]
    %v38 = vld [vmem:[#allocation2 + $0x40] sm:$0xff]
    %v39 = vld [vmem:[#allocation2 + $0x48] sm:$0xff]
    %v40 = vld [vmem:[#allocation2 + $0x50] sm:$0xff]
    %v41 = vld [vmem:[#allocation2 + $0x58] sm:$0xff]
    %v42 = vld [vmem:[#allocation2 + $0x60] sm:$0xff]
    %v43 = vld [vmem:[#allocation2 + $0x68] sm:$0xff]
    %v44 = vld [vmem:[#allocation2 + $0x70] sm:$0xff]
    %v45 = vld [vmem:[#allocation2 + $0x78] sm:$0xff]
    %v48 = vunpack.c.l.b16 %v28
    %v49 = vunpack.c.l.b16 %v29
    %v50 = vpack.c.b16 %v49, %v48
    %v67 = vunpack.c.l.b16 %v30
    %v68 = vunpack.c.h.b16 %v30
    %v69 = vunpack.c.l.b16 %v31
    %v70 = vunpack.c.h.b16 %v31
    %v71 = vunpack.c.l.b16 %v32
    %v72 = vunpack.c.h.b16 %v32
    %v73 = vunpack.c.l.b16 %v33
    %v74 = vunpack.c.h.b16 %v33
    %v75 = vunpack.c.l.b16 %v34
    %v76 = vunpack.c.h.b16 %v34
    %v77 = vunpack.c.l.b16 %v35
    %v78 = vunpack.c.h.b16 %v35
    %v79 = vunpack.c.l.b16 %v36
    %v80 = vunpack.c.h.b16 %v36
    %v81 = vunpack.c.l.b16 %v37
    %v82 = vunpack.c.h.b16 %v37
    %v83 = vunpack.c.l.b16 %v38
    %v84 = vunpack.c.h.b16 %v38
    %v85 = vunpack.c.l.b16 %v39
    %v86 = vunpack.c.h.b16 %v39
    %v87 = vunpack.c.l.b16 %v40
    %v88 = vunpack.c.h.b16 %v40
    %v89 = vunpack.c.l.b16 %v41
    %v90 = vunpack.c.h.b16 %v41
    %v91 = vunpack.c.l.b16 %v42
    %v92 = vunpack.c.h.b16 %v42
    %v93 = vunpack.c.l.b16 %v43
    %v94 = vunpack.c.h.b16 %v43
    %v95 = vunpack.c.l.b16 %v44
    %v96 = vunpack.c.h.b16 %v44
    %v97 = vunpack.c.l.b16 %v45
    %v98 = vunpack.c.h.b16 %v45
    %v99 = vpack.c.b16 %v75, %v67
    %v100 = vpack.c.b16 %v76, %v68
    %v101 = vpack.c.b16 %v77, %v69
    %v102 = vpack.c.b16 %v78, %v70
    %v103 = vpack.c.b16 %v79, %v71
    %v104 = vpack.c.b16 %v80, %v72
    %v105 = vpack.c.b16 %v81, %v73
    %v106 = vpack.c.b16 %v82, %v74
    %v107 = vpack.c.b16 %v91, %v83
    %v108 = vpack.c.b16 %v92, %v84
    %v109 = vpack.c.b16 %v93, %v85
    %v110 = vpack.c.b16 %v94, %v86
    %v111 = vpack.c.b16 %v95, %v87
    %v112 = vpack.c.b16 %v96, %v88
    %v113 = vpack.c.b16 %v97, %v89
    %v114 = vpack.c.b16 %v98, %v90
    %vm131 = vcmask 261120
    %v133 = vsel %vm131, %v50, 0
    %135 = vmatpush.bf16.msra.mxu0 0
    %136 = vmatpush.bf16.msra.mxu0 0
    %137 = vmatpush.bf16.msra.mxu0 0
    %138 = vmatpush.bf16.msra.mxu0 0
    %139 = vmatpush.bf16.msra.mxu0 0
    %140 = vmatpush.bf16.msra.mxu0 0
    %141 = vmatpush.bf16.msra.mxu0 %v107
    %142 = vmatpush.bf16.msra.mxu0 %v99
    %143 = vmatmul.bf16.gmra.mxu0 %v133
    %v144 = vpop.f32.mrf.mxu0
    %v145 = vadd.f32 0.0, %v144
    %v146 = vpop.f32.mrf.mxu0
    %v147 = vadd.f32 0.0, %v146
    %148 = vdwg.mxu0
    %149 = vmatpush.bf16.msra.mxu0 0
    %150 = vmatpush.bf16.msra.mxu0 0
    %151 = vmatpush.bf16.msra.mxu0 0
    %152 = vmatpush.bf16.msra.mxu0 0
    %153 = vmatpush.bf16.msra.mxu0 0
    %154 = vmatpush.bf16.msra.mxu0 0
    %155 = vmatpush.bf16.msra.mxu0 %v108
    %156 = vmatpush.bf16.msra.mxu0 %v100
    %157 = vmatmul.bf16.gmra.mxu0 %v133
    %v158 = vpop.f32.mrf.mxu0
    %v159 = vadd.f32 0.0, %v158
    %v160 = vpop.f32.mrf.mxu0
    %v161 = vadd.f32 0.0, %v160
    %162 = vdwg.mxu0
    %163 = vmatpush.bf16.msra.mxu0 0
    %164 = vmatpush.bf16.msra.mxu0 0
    %165 = vmatpush.bf16.msra.mxu0 0
    %166 = vmatpush.bf16.msra.mxu0 0
    %167 = vmatpush.bf16.msra.mxu0 0
    %168 = vmatpush.bf16.msra.mxu0 0
    %169 = vmatpush.bf16.msra.mxu0 %v109
    %170 = vmatpush.bf16.msra.mxu0 %v101
    %171 = vmatmul.bf16.gmra.mxu0 %v133
    %v172 = vpop.f32.mrf.mxu0
    %v173 = vadd.f32 0.0, %v172
    %v174 = vpop.f32.mrf.mxu0
    %v175 = vadd.f32 0.0, %v174
    %176 = vdwg.mxu0
    %177 = vmatpush.bf16.msra.mxu0 0
    %178 = vmatpush.bf16.msra.mxu0 0
    %179 = vmatpush.bf16.msra.mxu0 0
    %180 = vmatpush.bf16.msra.mxu0 0
    %181 = vmatpush.bf16.msra.mxu0 0
    %182 = vmatpush.bf16.msra.mxu0 0
    %183 = vmatpush.bf16.msra.mxu0 %v110
    %184 = vmatpush.bf16.msra.mxu0 %v102
    %185 = vmatmul.bf16.gmra.mxu0 %v133
    %v186 = vpop.f32.mrf.mxu0
    %v187 = vadd.f32 0.0, %v186
    %v188 = vpop.f32.mrf.mxu0
    %v189 = vadd.f32 0.0, %v188
    %190 = vdwg.mxu0
    %191 = vmatpush.bf16.msra.mxu0 0
    %192 = vmatpush.bf16.msra.mxu0 0
    %193 = vmatpush.bf16.msra.mxu0 0
    %194 = vmatpush.bf16.msra.mxu0 0
    %195 = vmatpush.bf16.msra.mxu0 0
    %196 = vmatpush.bf16.msra.mxu0 0
    %197 = vmatpush.bf16.msra.mxu0 %v111
    %198 = vmatpush.bf16.msra.mxu0 %v103
    %199 = vmatmul.bf16.gmra.mxu0 %v133
    %v200 = vpop.f32.mrf.mxu0
    %v201 = vadd.f32 0.0, %v200
    %v202 = vpop.f32.mrf.mxu0
    %v203 = vadd.f32 0.0, %v202
    %204 = vdwg.mxu0
    %205 = vmatpush.bf16.msra.mxu0 0
    %206 = vmatpush.bf16.msra.mxu0 0
    %207 = vmatpush.bf16.msra.mxu0 0
    %208 = vmatpush.bf16.msra.mxu0 0
    %209 = vmatpush.bf16.msra.mxu0 0
    %210 = vmatpush.bf16.msra.mxu0 0
    %211 = vmatpush.bf16.msra.mxu0 %v112
    %212 = vmatpush.bf16.msra.mxu0 %v104
    %213 = vmatmul.bf16.gmra.mxu0 %v133
    %v214 = vpop.f32.mrf.mxu0
    %v215 = vadd.f32 0.0, %v214
    %v216 = vpop.f32.mrf.mxu0
    %v217 = vadd.f32 0.0, %v216
    %218 = vdwg.mxu0
    %219 = vmatpush.bf16.msra.mxu0 0
    %220 = vmatpush.bf16.msra.mxu0 0
    %221 = vmatpush.bf16.msra.mxu0 0
    %222 = vmatpush.bf16.msra.mxu0 0
    %223 = vmatpush.bf16.msra.mxu0 0
    %224 = vmatpush.bf16.msra.mxu0 0
    %225 = vmatpush.bf16.msra.mxu0 %v113
    %226 = vmatpush.bf16.msra.mxu0 %v105
    %227 = vmatmul.bf16.gmra.mxu0 %v133
    %v228 = vpop.f32.mrf.mxu0
    %v229 = vadd.f32 0.0, %v228
    %v230 = vpop.f32.mrf.mxu0
    %v231 = vadd.f32 0.0, %v230
    %232 = vdwg.mxu0
    %233 = vmatpush.bf16.msra.mxu0 0
    %234 = vmatpush.bf16.msra.mxu0 0
    %235 = vmatpush.bf16.msra.mxu0 0
    %236 = vmatpush.bf16.msra.mxu0 0
    %237 = vmatpush.bf16.msra.mxu0 0
    %238 = vmatpush.bf16.msra.mxu0 0
    %239 = vmatpush.bf16.msra.mxu0 %v114
    %240 = vmatpush.bf16.msra.mxu0 %v106
    %241 = vmatmul.bf16.gmra.mxu0 %v133
    %v242 = vpop.f32.mrf.mxu0
    %v243 = vadd.f32 0.0, %v242
    %v244 = vpop.f32.mrf.mxu0
    %v245 = vadd.f32 0.0, %v244
    %246 = vdwg.mxu0
    %247 = vst [vmem:[%s2] sm:$0xff] %v145
    %248 = vst [vmem:[%s2 + $0x8] sm:$0xff] %v159
    %249 = vst [vmem:[%s2 + $0x10] sm:$0xff] %v173
    %250 = vst [vmem:[%s2 + $0x18] sm:$0xff] %v187
    %251 = vst [vmem:[%s2 + $0x20] sm:$0xff] %v201
    %252 = vst [vmem:[%s2 + $0x28] sm:$0xff] %v215
    %253 = vst [vmem:[%s2 + $0x30] sm:$0xff] %v229
    %254 = vst [vmem:[%s2 + $0x38] sm:$0xff] %v243
    %255 = vst [vmem:[%s2 + $0x40] sm:$0xff] %v147
    %256 = vst [vmem:[%s2 + $0x48] sm:$0xff] %v161
    %257 = vst [vmem:[%s2 + $0x50] sm:$0xff] %v175
    %258 = vst [vmem:[%s2 + $0x58] sm:$0xff] %v189
    %259 = vst [vmem:[%s2 + $0x60] sm:$0xff] %v203
    %260 = vst [vmem:[%s2 + $0x68] sm:$0xff] %v217
    %261 = vst [vmem:[%s2 + $0x70] sm:$0xff] %v231
    %262 = vst [vmem:[%s2 + $0x78] sm:$0xff] %v245
    // Predicated region
    $region14: #{dc_generator_forward.4} parent=1 // pred_check
      _
    $region15: #{dc_generator_forward.4} parent=1 // pred_check_branch
      %264 = sbr.rel (0) target = $region17
    $region16: #{dc_generator_forward.4} parent=1 // pred_region
      _
    $region17: #{dc_generator_forward.4} parent=1 // pred_fallthru
      _
    // Predicated region
    $region18: #{dc_generator_forward.4} parent=1 // pred_check
      _
    $region19: #{dc_generator_forward.4} parent=1 // pred_check_branch
      %266 = sbr.rel (0) target = $region21
    $region20: #{dc_generator_forward.4} parent=1 // pred_region
      _
    $region21: #{dc_generator_forward.4} parent=1 // pred_fallthru
      _
    %267 = vsyncpa [#allocation3], 1

// kernel: dc_generator_forward.5
$region0: #{dc_generator_forward.5}
  #allocation0 [shape = 'u32[]', space=smem, size = 0x4, offset = 0x4, fixed_abs, tag = 'smem constant byte address 0x4 - core index']
  #allocation1 [shape = 'u32[72,128]{1,0:T(1,128)}', space=vmem, size = 0x9000, scoped, tag = 'internal scratch']
  %s0 = inlined_call_operand.vmem [shape: bf16[64,256], index: 0, kind: input, shape index: {}]
  %s1 = inlined_call_operand.hbm [shape: bf16[256,128], index: 1, kind: input, shape index: {}]
  %s2 = inlined_call_operand.vmem [shape: f32[64,128], index: 2, kind: output, shape index: {}]
  %s3 = sld [smem:[#allocation0]]
  $region45: #{dc_generator_forward.5} parent=0
    _
  %s5 = ssub.s32 1, %s3
  %s6 = scalar_select 0, %s5, %s3
  $region1: #{dc_generator_forward.5} parent=0
    #allocation2 [shape = 'u8[65536]{0}', space=vmem, size = 0x10000, scoped, tag = 'input window, operand 1, single buffered']
    #allocation3 [shape = 's32[2]{0}', space=sflag, size = 0x8, scoped, tag = 'scoped memory for dc_generator_forward.5']
    %7 = vsyncpa [#allocation3], 0
    loop: start=0, step=1, limit=6
    $region2: #{dc_generator_forward.5} parent=1 // loop_pre_header
      _
    $region3: #{dc_generator_forward.5} parent=1 // loop_header
      %s9 = sphi 0, %s13
      %p10 = scmp.ge.s32.totalorder %s9, 6
      %s19 = sphi 0, %s21
      %s22 = sphi 0, %s19
      %s23 = sphi 0, %s22
      %s39 = sphi 0, %s23
      %s43 = sphi 0, %s43
      %s45 = sphi 0, %s43
      %s46 = sphi 0, %s45
      %s60 = sphi 0, %s46
      %s66 = sphi 0, %s68
      %s69 = sphi 0, %s66
      %s70 = sphi 0, %s69
      %s86 = sphi 0, %s70
    $region4: #{dc_generator_forward.5} parent=1 // loop_header_branch
      %12 = sbr.rel (%p10) target = $region8
    $region5: #{dc_generator_forward.5} parent=1 // loop_body
      %s14 = ssub.s32 %s9, 1
      %s15 = ssub.s32 %s9, 2
      %s16 = sadd.s32 %s9, 1
      %s17 = ssub.s32 %s9, %s16
      %p18 = scmp.eq.s32.totalorder %s17, 0
      %s20 = sadd.s32 %s19, 1
      %s21 = scalar_select %p18, %s19, %s20
      %p24 = pneg %p18
      %p25 = scmp.eq.s32.totalorder %s9, 3
      %p26 = por %p24, %p25
      %p27 = scmp.ne.s32.totalorder %s19, %s22
      %p28 = scmp.eq.s32.totalorder %s9, 0
      %p29 = por %p27, %p28
      %p30 = scmp.ne.s32.totalorder %s19, %s22
      %p31 = scmp.eq.s32.totalorder %s14, 3
      %p32 = por %p30, %p31
      %p33 = scmp.ne.s32.totalorder %s22, %s23
      %p34 = scmp.eq.s32.totalorder %s14, 0
      %p35 = por %p33, %p34
      %p36 = scmp.ne.s32.totalorder %s22, %s23
      %p37 = scmp.eq.s32.totalorder %s15, 3
      %p38 = por %p36, %p37
      %p40 = scmp.ne.s32.totalorder %s23, %s39
      %p41 = scmp.eq.s32.totalorder %s15, 0
      %p42 = por %p40, %p41
      %s44 = sadd.s32 %s43, 1
      %p47 = scmp.eq.s32.totalorder %s9, 3
      %p48 = scmp.ne.s32.totalorder %s43, %s45
      %p49 = scmp.eq.s32.totalorder %s9, 0
      %p50 = por %p48, %p49
      %p51 = scmp.ne.s32.totalorder %s43, %s45
      %p52 = scmp.eq.s32.totalorder %s14, 3
      %p53 = por %p51, %p52
      %p54 = scmp.ne.s32.totalorder %s45, %s46
      %p55 = scmp.eq.s32.totalorder %s14, 0
      %p56 = por %p54, %p55
      %p57 = scmp.ne.s32.totalorder %s45, %s46
      %p58 = scmp.eq.s32.totalorder %s15, 3
      %p59 = por %p57, %p58
      %p61 = scmp.ne.s32.totalorder %s46, %s60
      %p62 = scmp.eq.s32.totalorder %s15, 0
      %p63 = por %p61, %p62
      %s64 = ssub.s32 %s9, %s16
      %p65 = scmp.eq.s32.totalorder %s64, 0
      %s67 = sadd.s32 %s66, 1
      %s68 = scalar_select %p65, %s66, %s67
      %p71 = pneg %p65
      %p72 = scmp.eq.s32.totalorder %s9, 3
      %p73 = por %p71, %p72
      %p74 = scmp.ne.s32.totalorder %s66, %s69
      %p75 = scmp.eq.s32.totalorder %s9, 0
      %p76 = por %p74, %p75
      %p77 = scmp.ne.s32.totalorder %s66, %s69
      %p78 = scmp.eq.s32.totalorder %s14, 3
      %p79 = por %p77, %p78
      %p80 = scmp.ne.s32.totalorder %s69, %s70
      %p81 = scmp.eq.s32.totalorder %s14, 0
      %p82 = por %p80, %p81
      %p83 = scmp.ne.s32.totalorder %s69, %s70
      %p84 = scmp.eq.s32.totalorder %s15, 3
      %p85 = por %p83, %p84
      %p87 = scmp.ne.s32.totalorder %s70, %s86
      %p88 = scmp.eq.s32.totalorder %s15, 0
      %p89 = por %p87, %p88
      %p90 = scmp.le.s32.totalorder 1, %s9
      %p91 = scmp.lt.s32.totalorder %s9, 5
      %p92 = pnand %p90, %p91
      %p93 = pneg %p92
      // Predicated region
      $region9: #{dc_generator_forward.5} parent=5 // pred_check
        _
      $region10: #{dc_generator_forward.5} parent=5 // pred_check_branch
        %95 = sbr.rel (%p92) target = $region12
      $region11: #{dc_generator_forward.5} parent=5 // pred_region
        %s96 = ssub.s32 %s9, 1
        // Predicated region
        $region13: #{dc_generator_forward.5} parent=11 // pred_check
          %p97 = pneg %p56
        $region14: #{dc_generator_forward.5} parent=11 // pred_check_branch
          %99 = sbr.rel (%p97) target = $region16
        $region15: #{dc_generator_forward.5} parent=11 // pred_region
          %101 = vsyncadd [#allocation3], 0
          %s102 = sshll.u32 %s1, 4
          %s103 = int_to_ptr.hbm [resolvable:$true] %s102
          %s104 = sshll.u32 [#allocation2], 4
          %s105 = int_to_ptr.vmem [resolvable:$true] %s104
          %110 = dma.hbm_to_vmem [thread:$0]  %s103, 2048, %s105, [#allocation3], 64, 64, 4
        $region16: #{dc_generator_forward.5} parent=11 // pred_fallthru
          _
      $region12: #{dc_generator_forward.5} parent=5 // pred_fallthru
        _
      %p111 = scmp.lt.s32.totalorder %s9, 4
      // Predicated region
      $region17: #{dc_generator_forward.5} parent=5 // pred_check
        %p112 = pneg %p111
      $region18: #{dc_generator_forward.5} parent=5 // pred_check_branch
        %114 = sbr.rel (%p112) target = $region20
      $region19: #{dc_generator_forward.5} parent=5 // pred_region
        // Predicated region
        $region21: #{dc_generator_forward.5} parent=19 // pred_check
          %p115 = pneg %p29
        $region22: #{dc_generator_forward.5} parent=19 // pred_check_branch
          %117 = sbr.rel (%p115) target = $region24
        $region23: #{dc_generator_forward.5} parent=19 // pred_region
          %s118 = smul.u32 2, %s9
          %p119 = scmp.lt.s32.totalorder %s118, 7
          %s120 = scalar_select %p119, %s118, 7
          %s121 = smul.addr %s120, 2
          %s122 = smul.addr %s121, 4
          %s123 = scalar_lea.vmem %s0, %s122
          %s124 = smul.u32 2, %s9
        $region24: #{dc_generator_forward.5} parent=19 // pred_fallthru
          _
      $region20: #{dc_generator_forward.5} parent=5 // pred_fallthru
        _
      %p125 = scmp.le.s32.totalorder 1, %s9
      %p126 = scmp.lt.s32.totalorder %s9, 5
      %p127 = pnand %p125, %p126
      %p128 = pneg %p127
      // Predicated region
      $region25: #{dc_generator_forward.5} parent=5 // pred_check
        _
      $region26: #{dc_generator_forward.5} parent=5 // pred_check_branch
        %130 = sbr.rel (%p127) target = $region28
      $region27: #{dc_generator_forward.5} parent=5 // pred_region
        %s131 = ssub.s32 %s9, 1
        // Predicated region
        $region29: #{dc_generator_forward.5} parent=27 // pred_check
          %p132 = pneg %p56
        $region30: #{dc_generator_forward.5} parent=27 // pred_check_branch
          %134 = sbr.rel (%p132) target = $region32
        $region31: #{dc_generator_forward.5} parent=27 // pred_region
          %136 = dma.done [#allocation3], 2048
        $region32: #{dc_generator_forward.5} parent=27 // pred_fallthru
          _
        %s137 = smul.u32 2, %s14
        %p138 = scmp.lt.s32.totalorder %s137, 7
        %s139 = scalar_select %p138, %s137, 7
        %s140 = smul.addr %s139, 2
        %s141 = smul.addr %s140, 4
        %s142 = scalar_lea.vmem %s0, %s141
        %p143 = pneg %p35
        %p144 = pneg %p32
        %p145 = pneg %p56
        %p146 = pneg %p53
        %p147 = pneg %p82
        %p148 = pneg %p79
        %s149 = smul.u32 2, %s14
        %p150 = scmp.lt.s32.totalorder %s149, 7
        %s151 = scalar_select %p150, %s149, 7
        %s152 = smul.addr %s151, 8
        %s153 = scalar_lea.vmem %s2, %s152
        %s154 = smul.u32 2, %s14
        %p155 = scmp.lt.s32.totalorder %s154, 7
        %s156 = scalar_select %p155, %s154, 7
        %s157 = smul.addr %s156, 2
        %s158 = smul.addr %s157, 4
        %s159 = scalar_lea.vmem %s0, %s158
        %s160 = smul.u32 2, %s14
        %s161 = smul.u32 2, %s14
        %p162 = scmp.lt.s32.totalorder %s161, 7
        %s163 = scalar_select %p162, %s161, 7
        %s164 = smul.addr %s163, 8
        %s165 = scalar_lea.vmem %s2, %s164
        %s166 = smul.u32 2, %s14
        %v167 = vld [vmem:[%s159] sm:$0xff]
        %v168 = vld [vmem:[%s159 + $0x8] sm:$0xff]
        %v169 = vld [vmem:[#allocation2] sm:$0xf]
        %v170 = vld [vmem:[#allocation2 + $0x4] sm:$0xf]
        %v171 = vld [vmem:[#allocation2 + $0x8] sm:$0xf]
        %v172 = vld [vmem:[#allocation2 + $0xc] sm:$0xf]
        %v173 = vld [vmem:[#allocation2 + $0x10] sm:$0xf]
        %v174 = vld [vmem:[#allocation2 + $0x14] sm:$0xf]
        %v175 = vld [vmem:[#allocation2 + $0x18] sm:$0xf]
        %v176 = vld [vmem:[#allocation2 + $0x1c] sm:$0xf]
        %v177 = vld [vmem:[#allocation2 + $0x20] sm:$0xf]
        %v178 = vld [vmem:[#allocation2 + $0x24] sm:$0xf]
        %v179 = vld [vmem:[#allocation2 + $0x28] sm:$0xf]
        %v180 = vld [vmem:[#allocation2 + $0x2c] sm:$0xf]
        %v181 = vld [vmem:[#allocation2 + $0x30] sm:$0xf]
        %v182 = vld [vmem:[#allocation2 + $0x34] sm:$0xf]
        %v183 = vld [vmem:[#allocation2 + $0x38] sm:$0xf]
        %v184 = vld [vmem:[#allocation2 + $0x3c] sm:$0xf]
        %v185 = vld [vmem:[#allocation2 + $0x40] sm:$0xf]
        %v186 = vld [vmem:[#allocation2 + $0x44] sm:$0xf]
        %v187 = vld [vmem:[#allocation2 + $0x48] sm:$0xf]
        %v188 = vld [vmem:[#allocation2 + $0x4c] sm:$0xf]
        %v189 = vld [vmem:[#allocation2 + $0x50] sm:$0xf]
        %v190 = vld [vmem:[#allocation2 + $0x54] sm:$0xf]
        %v191 = vld [vmem:[#allocation2 + $0x58] sm:$0xf]
        %v192 = vld [vmem:[#allocation2 + $0x5c] sm:$0xf]
        %v193 = vld [vmem:[#allocation2 + $0x60] sm:$0xf]
        %v194 = vld [vmem:[#allocation2 + $0x64] sm:$0xf]
        %v195 = vld [vmem:[#allocation2 + $0x68] sm:$0xf]
        %v196 = vld [vmem:[#allocation2 + $0x6c] sm:$0xf]
        %v197 = vld [vmem:[#allocation2 + $0x70] sm:$0xf]
        %v198 = vld [vmem:[#allocation2 + $0x74] sm:$0xf]
        %v199 = vld [vmem:[#allocation2 + $0x78] sm:$0xf]
        %v200 = vld [vmem:[#allocation2 + $0x7c] sm:$0xf]
        %v203 = vunpack.c.l.b16 %v167
        %v204 = vunpack.c.h.b16 %v167
        %v205 = vunpack.c.l.b16 %v168
        %v206 = vunpack.c.h.b16 %v168
        %v207 = vpack.c.b16 %v205, %v203
        %v208 = vpack.c.b16 %v206, %v204
        %v243 = vunpack.c.l.b16 %v169
        %v244 = vunpack.c.l.b16 %v170
        %v245 = vunpack.c.l.b16 %v171
        %v246 = vunpack.c.l.b16 %v172
        %v247 = vunpack.c.l.b16 %v173
        %v248 = vunpack.c.l.b16 %v174
        %v249 = vunpack.c.l.b16 %v175
        %v250 = vunpack.c.l.b16 %v176
        %v251 = vunpack.c.l.b16 %v177
        %v252 = vunpack.c.l.b16 %v178
        %v253 = vunpack.c.l.b16 %v179
        %v254 = vunpack.c.l.b16 %v180
        %v255 = vunpack.c.l.b16 %v181
        %v256 = vunpack.c.l.b16 %v182
        %v257 = vunpack.c.l.b16 %v183
        %v258 = vunpack.c.l.b16 %v184
        %v259 = vunpack.c.l.b16 %v185
        %v260 = vunpack.c.l.b16 %v186
        %v261 = vunpack.c.l.b16 %v187
        %v262 = vunpack.c.l.b16 %v188
        %v263 = vunpack.c.l.b16 %v189
        %v264 = vunpack.c.l.b16 %v190
        %v265 = vunpack.c.l.b16 %v191
        %v266 = vunpack.c.l.b16 %v192
        %v267 = vunpack.c.l.b16 %v193
        %v268 = vunpack.c.l.b16 %v194
        %v269 = vunpack.c.l.b16 %v195
        %v270 = vunpack.c.l.b16 %v196
        %v271 = vunpack.c.l.b16 %v197
        %v272 = vunpack.c.l.b16 %v198
        %v273 = vunpack.c.l.b16 %v199
        %v274 = vunpack.c.l.b16 %v200
        %v275 = vpack.c.b16 %v244, %v243
        %v276 = vpack.c.b16 %v246, %v245
        %v277 = vpack.c.b16 %v248, %v247
        %v278 = vpack.c.b16 %v250, %v249
        %v279 = vpack.c.b16 %v252, %v251
        %v280 = vpack.c.b16 %v254, %v253
        %v281 = vpack.c.b16 %v256, %v255
        %v282 = vpack.c.b16 %v258, %v257
        %v283 = vpack.c.b16 %v260, %v259
        %v284 = vpack.c.b16 %v262, %v261
        %v285 = vpack.c.b16 %v264, %v263
        %v286 = vpack.c.b16 %v266, %v265
        %v287 = vpack.c.b16 %v268, %v267
        %v288 = vpack.c.b16 %v270, %v269
        %v289 = vpack.c.b16 %v272, %v271
        %v290 = vpack.c.b16 %v274, %v273
        %307 = vmatpush.bf16.msra.mxu0 %v282
        %308 = vmatpush.bf16.msra.mxu0 %v281
        %309 = vmatpush.bf16.msra.mxu0 %v280
        %310 = vmatpush.bf16.msra.mxu0 %v279
        %311 = vmatpush.bf16.msra.mxu0 %v278
        %312 = vmatpush.bf16.msra.mxu0 %v277
        %313 = vmatpush.bf16.msra.mxu0 %v276
        %314 = vmatpush.bf16.msra.mxu0 %v275
        %315 = vmatmul.bf16.gmra.mxu0 %v207
        %v316 = vpop.f32.mrf.mxu0
        %v317 = vadd.f32 0.0, %v316
        %v318 = vpop.f32.mrf.mxu0
        %v319 = vadd.f32 0.0, %v318
        %320 = vdwg.mxu0
        %321 = vmatpush.bf16.msra.mxu0 %v290
        %322 = vmatpush.bf16.msra.mxu0 %v289
        %323 = vmatpush.bf16.msra.mxu0 %v288
        %324 = vmatpush.bf16.msra.mxu0 %v287
        %325 = vmatpush.bf16.msra.mxu0 %v286
        %326 = vmatpush.bf16.msra.mxu0 %v285
        %327 = vmatpush.bf16.msra.mxu0 %v284
        %328 = vmatpush.bf16.msra.mxu0 %v283
        %329 = vmatmul.bf16.gmra.mxu0 %v208
        %v330 = vpop.f32.mrf.mxu0
        %v331 = vadd.f32 %v317, %v330
        %v332 = vpop.f32.mrf.mxu0
        %v333 = vadd.f32 %v319, %v332
        %334 = vdwg.mxu0
        %335 = vst [vmem:[%s165] sm:$0xff] %v331
        %336 = vst [vmem:[%s165 + $0x8] sm:$0xff] %v333
        %s337 = smul.u32 2, %s14
        %p338 = scmp.lt.s32.totalorder %s337, 7
        %s339 = scalar_select %p338, %s337, 7
        %s340 = smul.addr %s339, 8
        %s341 = scalar_lea.vmem %s2, %s340
        // Predicated region
        $region33: #{dc_generator_forward.5} parent=27 // pred_check
          %p342 = pneg %p79
        $region34: #{dc_generator_forward.5} parent=27 // pred_check_branch
          %344 = sbr.rel (%p342) target = $region36
        $region35: #{dc_generator_forward.5} parent=27 // pred_region
          %s345 = smul.u32 2, %s14
        $region36: #{dc_generator_forward.5} parent=27 // pred_fallthru
          _
      $region28: #{dc_generator_forward.5} parent=5 // pred_fallthru
        _
      %p346 = scmp.le.s32.totalorder 2, %s9
      // Predicated region
      $region37: #{dc_generator_forward.5} parent=5 // pred_check
        %p347 = pneg %p346
      $region38: #{dc_generator_forward.5} parent=5 // pred_check_branch
        %349 = sbr.rel (%p347) target = $region40
      $region39: #{dc_generator_forward.5} parent=5 // pred_region
        %s350 = ssub.s32 %s9, 2
        // Predicated region
        $region41: #{dc_generator_forward.5} parent=39 // pred_check
          %p351 = pneg %p85
        $region42: #{dc_generator_forward.5} parent=39 // pred_check_branch
          %353 = sbr.rel (%p351) target = $region44
        $region43: #{dc_generator_forward.5} parent=39 // pred_region
          %s354 = smul.u32 2, %s15
          %p355 = scmp.lt.s32.totalorder %s354, 7
          %s356 = scalar_select %p355, %s354, 7
          %s357 = smul.addr %s356, 8
          %s358 = scalar_lea.vmem %s2, %s357
        $region44: #{dc_generator_forward.5} parent=39 // pred_fallthru
          _
      $region40: #{dc_generator_forward.5} parent=5 // pred_fallthru
        _
    $region6: #{dc_generator_forward.5} parent=1 // loop_footer
      %s13 = sadd.s32 1, %s9
    $region7: #{dc_generator_forward.5} parent=1 // loop_footer_branch
      %8 = sbr.rel target = $region3
    $region8: #{dc_generator_forward.5} parent=1 // loop_exit
      _
    %359 = vsyncpa [#allocation3], 1
    %s360 = scalar_lea.sflag [#allocation3], 1
    %361 = vsyncpa %s360, 1

// kernel: dc_generator_forward.6
$region0: #{dc_generator_forward.6}
  #allocation0 [shape = 'u32[]', space=smem, size = 0x4, offset = 0x4, fixed_abs, tag = 'smem constant byte address 0x4 - core index']
  #allocation1 [shape = 'u32[72,128]{1,0:T(1,128)}', space=vmem, size = 0x9000, scoped, tag = 'internal scratch']
  %s0 = inlined_call_operand.vmem [shape: bf16[192,128], index: 0, kind: input, shape index: {}]
  %s1 = inlined_call_operand.vmem [shape: bf16[128,128], index: 1, kind: input, shape index: {}]
  %s2 = inlined_call_operand.vmem [shape: f32[192,128], index: 2, kind: output, shape index: {}]
  %s3 = sld [smem:[#allocation0]]
  $region41: #{dc_generator_forward.6} parent=0
    _
  %s5 = ssub.s32 1, %s3
  %s6 = scalar_select 0, %s5, %s3
  loop: start=0, step=1, limit=6
  $region2: #{dc_generator_forward.6} parent=0 // loop_pre_header
    _
  $region3: #{dc_generator_forward.6} parent=0 // loop_header
    %s8 = sphi 0, %s12
    %p9 = scmp.ge.s32.totalorder %s8, 6
    %s18 = sphi 0, %s20
    %s21 = sphi 0, %s18
    %s22 = sphi 0, %s21
    %s38 = sphi 0, %s22
    %s42 = sphi 0, %s42
    %s44 = sphi 0, %s42
    %s45 = sphi 0, %s44
    %s59 = sphi 0, %s45
    %s65 = sphi 0, %s67
    %s68 = sphi 0, %s65
    %s69 = sphi 0, %s68
    %s85 = sphi 0, %s69
  $region4: #{dc_generator_forward.6} parent=0 // loop_header_branch
    %11 = sbr.rel (%p9) target = $region8
  $region5: #{dc_generator_forward.6} parent=0 // loop_body
    %s13 = ssub.s32 %s8, 1
    %s14 = ssub.s32 %s8, 2
    %s15 = sadd.s32 %s8, 1
    %s16 = ssub.s32 %s8, %s15
    %p17 = scmp.eq.s32.totalorder %s16, 0
    %s19 = sadd.s32 %s18, 1
    %s20 = scalar_select %p17, %s18, %s19
    %p23 = pneg %p17
    %p24 = scmp.eq.s32.totalorder %s8, 3
    %p25 = por %p23, %p24
    %p26 = scmp.ne.s32.totalorder %s18, %s21
    %p27 = scmp.eq.s32.totalorder %s8, 0
    %p28 = por %p26, %p27
    %p29 = scmp.ne.s32.totalorder %s18, %s21
    %p30 = scmp.eq.s32.totalorder %s13, 3
    %p31 = por %p29, %p30
    %p32 = scmp.ne.s32.totalorder %s21, %s22
    %p33 = scmp.eq.s32.totalorder %s13, 0
    %p34 = por %p32, %p33
    %p35 = scmp.ne.s32.totalorder %s21, %s22
    %p36 = scmp.eq.s32.totalorder %s14, 3
    %p37 = por %p35, %p36
    %p39 = scmp.ne.s32.totalorder %s22, %s38
    %p40 = scmp.eq.s32.totalorder %s14, 0
    %p41 = por %p39, %p40
    %s43 = sadd.s32 %s42, 1
    %p46 = scmp.eq.s32.totalorder %s8, 3
    %p47 = scmp.ne.s32.totalorder %s42, %s44
    %p48 = scmp.eq.s32.totalorder %s8, 0
    %p49 = por %p47, %p48
    %p50 = scmp.ne.s32.totalorder %s42, %s44
    %p51 = scmp.eq.s32.totalorder %s13, 3
    %p52 = por %p50, %p51
    %p53 = scmp.ne.s32.totalorder %s44, %s45
    %p54 = scmp.eq.s32.totalorder %s13, 0
    %p55 = por %p53, %p54
    %p56 = scmp.ne.s32.totalorder %s44, %s45
    %p57 = scmp.eq.s32.totalorder %s14, 3
    %p58 = por %p56, %p57
    %p60 = scmp.ne.s32.totalorder %s45, %s59
    %p61 = scmp.eq.s32.totalorder %s14, 0
    %p62 = por %p60, %p61
    %s63 = ssub.s32 %s8, %s15
    %p64 = scmp.eq.s32.totalorder %s63, 0
    %s66 = sadd.s32 %s65, 1
    %s67 = scalar_select %p64, %s65, %s66
    %p70 = pneg %p64
    %p71 = scmp.eq.s32.totalorder %s8, 3
    %p72 = por %p70, %p71
    %p73 = scmp.ne.s32.totalorder %s65, %s68
    %p74 = scmp.eq.s32.totalorder %s8, 0
    %p75 = por %p73, %p74
    %p76 = scmp.ne.s32.totalorder %s65, %s68
    %p77 = scmp.eq.s32.totalorder %s13, 3
    %p78 = por %p76, %p77
    %p79 = scmp.ne.s32.totalorder %s68, %s69
    %p80 = scmp.eq.s32.totalorder %s13, 0
    %p81 = por %p79, %p80
    %p82 = scmp.ne.s32.totalorder %s68, %s69
    %p83 = scmp.eq.s32.totalorder %s14, 3
    %p84 = por %p82, %p83
    %p86 = scmp.ne.s32.totalorder %s69, %s85
    %p87 = scmp.eq.s32.totalorder %s14, 0
    %p88 = por %p86, %p87
    %p89 = scmp.le.s32.totalorder 1, %s8
    %p90 = scmp.lt.s32.totalorder %s8, 5
    %p91 = pnand %p89, %p90
    %p92 = pneg %p91
    // Predicated region
    $region9: #{dc_generator_forward.6} parent=5 // pred_check
      _
    $region10: #{dc_generator_forward.6} parent=5 // pred_check_branch
      %94 = sbr.rel (%p91) target = $region12
    $region11: #{dc_generator_forward.6} parent=5 // pred_region
      %s95 = ssub.s32 %s8, 1
      // Predicated region
      $region13: #{dc_generator_forward.6} parent=11 // pred_check
        %p96 = pneg %p55
      $region14: #{dc_generator_forward.6} parent=11 // pred_check_branch
        %98 = sbr.rel (%p96) target = $region16
      $region15: #{dc_generator_forward.6} parent=11 // pred_region
        _
      $region16: #{dc_generator_forward.6} parent=11 // pred_fallthru
        _
    $region12: #{dc_generator_forward.6} parent=5 // pred_fallthru
      _
    %p99 = scmp.lt.s32.totalorder %s8, 4
    // Predicated region
    $region17: #{dc_generator_forward.6} parent=5 // pred_check
      %p100 = pneg %p99
    $region18: #{dc_generator_forward.6} parent=5 // pred_check_branch
      %102 = sbr.rel (%p100) target = $region20
    $region19: #{dc_generator_forward.6} parent=5 // pred_region
      // Predicated region
      $region21: #{dc_generator_forward.6} parent=19 // pred_check
        %p103 = pneg %p28
      $region22: #{dc_generator_forward.6} parent=19 // pred_check_branch
        %105 = sbr.rel (%p103) target = $region24
      $region23: #{dc_generator_forward.6} parent=19 // pred_region
        %s106 = smul.u32 6, %s8
        %p107 = scmp.lt.s32.totalorder %s106, 23
        %s108 = scalar_select %p107, %s106, 23
        %s109 = smul.addr %s108, 4
        %s110 = scalar_lea.vmem %s0, %s109
        %s111 = smul.u32 6, %s8
      $region24: #{dc_generator_forward.6} parent=19 // pred_fallthru
        _
    $region20: #{dc_generator_forward.6} parent=5 // pred_fallthru
      _
    %p112 = scmp.le.s32.totalorder 1, %s8
    %p113 = scmp.lt.s32.totalorder %s8, 5
    %p114 = pnand %p112, %p113
    %p115 = pneg %p114
    // Predicated region
    $region25: #{dc_generator_forward.6} parent=5 // pred_check
      _
    $region26: #{dc_generator_forward.6} parent=5 // pred_check_branch
      %117 = sbr.rel (%p114) target = $region28
    $region27: #{dc_generator_forward.6} parent=5 // pred_region
      %s118 = ssub.s32 %s8, 1
      %s119 = smul.u32 6, %s13
      %p120 = scmp.lt.s32.totalorder %s119, 23
      %s121 = scalar_select %p120, %s119, 23
      %s122 = smul.addr %s121, 4
      %s123 = scalar_lea.vmem %s0, %s122
      %p124 = pneg %p34
      %p125 = pneg %p31
      %p126 = pneg %p55
      %p127 = pneg %p52
      %p128 = pneg %p81
      %p129 = pneg %p78
      %s130 = smul.u32 6, %s13
      %p131 = scmp.lt.s32.totalorder %s130, 23
      %s132 = scalar_select %p131, %s130, 23
      %s133 = smul.addr %s132, 8
      %s134 = scalar_lea.vmem %s2, %s133
      %s135 = smul.u32 6, %s13
      %p136 = scmp.lt.s32.totalorder %s135, 23
      %s137 = scalar_select %p136, %s135, 23
      %s138 = smul.addr %s137, 4
      %s139 = scalar_lea.vmem %s0, %s138
      %s140 = smul.u32 6, %s13
      %s141 = smul.u32 6, %s13
      %p142 = scmp.lt.s32.totalorder %s141, 23
      %s143 = scalar_select %p142, %s141, 23
      %s144 = smul.addr %s143, 8
      %s145 = scalar_lea.vmem %s2, %s144
      %s146 = smul.u32 6, %s13
      %v147 = vld [vmem:[%s139] sm:$0xf]
      %v148 = vld [vmem:[%s139 + $0x4] sm:$0xf]
      %v149 = vld [vmem:[%s139 + $0x8] sm:$0xf]
      %v150 = vld [vmem:[%s139 + $0xc] sm:$0xf]
      %v151 = vld [vmem:[%s139 + $0x10] sm:$0xf]
      %v152 = vld [vmem:[%s139 + $0x14] sm:$0xf]
      %v153 = vld [vmem:[%s1] sm:$0xf]
      %v154 = vld [vmem:[%s1 + $0x4] sm:$0xf]
      %v155 = vld [vmem:[%s1 + $0x8] sm:$0xf]
      %v156 = vld [vmem:[%s1 + $0xc] sm:$0xf]
      %v157 = vld [vmem:[%s1 + $0x10] sm:$0xf]
      %v158 = vld [vmem:[%s1 + $0x14] sm:$0xf]
      %v159 = vld [vmem:[%s1 + $0x18] sm:$0xf]
      %v160 = vld [vmem:[%s1 + $0x1c] sm:$0xf]
      %v161 = vld [vmem:[%s1 + $0x20] sm:$0xf]
      %v162 = vld [vmem:[%s1 + $0x24] sm:$0xf]
      %v163 = vld [vmem:[%s1 + $0x28] sm:$0xf]
      %v164 = vld [vmem:[%s1 + $0x2c] sm:$0xf]
      %v165 = vld [vmem:[%s1 + $0x30] sm:$0xf]
      %v166 = vld [vmem:[%s1 + $0x34] sm:$0xf]
      %v167 = vld [vmem:[%s1 + $0x38] sm:$0xf]
      %v168 = vld [vmem:[%s1 + $0x3c] sm:$0xf]
      %v175 = vunpack.c.l.b16 %v147
      %v176 = vunpack.c.l.b16 %v148
      %v177 = vunpack.c.l.b16 %v149
      %v178 = vunpack.c.l.b16 %v150
      %v179 = vunpack.c.l.b16 %v151
      %v180 = vunpack.c.l.b16 %v152
      %v181 = vpack.c.b16 %v176, %v175
      %v182 = vpack.c.b16 %v178, %v177
      %v183 = vpack.c.b16 %v180, %v179
      %v203 = vunpack.c.l.b16 %v153
      %v204 = vunpack.c.l.b16 %v154
      %v205 = vunpack.c.l.b16 %v155
      %v206 = vunpack.c.l.b16 %v156
      %v207 = vunpack.c.l.b16 %v157
      %v208 = vunpack.c.l.b16 %v158
      %v209 = vunpack.c.l.b16 %v159
      %v210 = vunpack.c.l.b16 %v160
      %v211 = vunpack.c.l.b16 %v161
      %v212 = vunpack.c.l.b16 %v162
      %v213 = vunpack.c.l.b16 %v163
      %v214 = vunpack.c.l.b16 %v164
      %v215 = vunpack.c.l.b16 %v165
      %v216 = vunpack.c.l.b16 %v166
      %v217 = vunpack.c.l.b16 %v167
      %v218 = vunpack.c.l.b16 %v168
      %v219 = vpack.c.b16 %v204, %v203
      %v220 = vpack.c.b16 %v206, %v205
      %v221 = vpack.c.b16 %v208, %v207
      %v222 = vpack.c.b16 %v210, %v209
      %v223 = vpack.c.b16 %v212, %v211
      %v224 = vpack.c.b16 %v214, %v213
      %v225 = vpack.c.b16 %v216, %v215
      %v226 = vpack.c.b16 %v218, %v217
      %235 = vmatpush.bf16.msra.mxu0 %v226
      %236 = vmatpush.bf16.msra.mxu0 %v225
      %237 = vmatpush.bf16.msra.mxu0 %v224
      %238 = vmatpush.bf16.msra.mxu0 %v223
      %239 = vmatpush.bf16.msra.mxu0 %v222
      %240 = vmatpush.bf16.msra.mxu0 %v221
      %241 = vmatpush.bf16.msra.mxu0 %v220
      %242 = vmatpush.bf16.msra.mxu0 %v219
      %243 = vmatmul.bf16.gmra.mxu0 %v181
      %v244 = vpop.f32.mrf.mxu0
      %v245 = vadd.f32 0.0, %v244
      %v246 = vpop.f32.mrf.mxu0
      %v247 = vadd.f32 0.0, %v246
      %248 = vmatmul.bf16.gmra.mxu0 %v182
      %v249 = vpop.f32.mrf.mxu0
      %v250 = vadd.f32 0.0, %v249
      %v251 = vpop.f32.mrf.mxu0
      %v252 = vadd.f32 0.0, %v251
      %253 = vmatmul.bf16.gmra.mxu0 %v183
      %v254 = vpop.f32.mrf.mxu0
      %v255 = vadd.f32 0.0, %v254
      %v256 = vpop.f32.mrf.mxu0
      %v257 = vadd.f32 0.0, %v256
      %258 = vdwg.mxu0
      %259 = vst [vmem:[%s145] sm:$0xff] %v245
      %260 = vst [vmem:[%s145 + $0x8] sm:$0xff] %v247
      %261 = vst [vmem:[%s145 + $0x10] sm:$0xff] %v250
      %262 = vst [vmem:[%s145 + $0x18] sm:$0xff] %v252
      %263 = vst [vmem:[%s145 + $0x20] sm:$0xff] %v255
      %264 = vst [vmem:[%s145 + $0x28] sm:$0xff] %v257
      %s265 = smul.u32 6, %s13
      %p266 = scmp.lt.s32.totalorder %s265, 23
      %s267 = scalar_select %p266, %s265, 23
      %s268 = smul.addr %s267, 8
      %s269 = scalar_lea.vmem %s2, %s268
      // Predicated region
      $region29: #{dc_generator_forward.6} parent=27 // pred_check
        %p270 = pneg %p78
      $region30: #{dc_generator_forward.6} parent=27 // pred_check_branch
        %272 = sbr.rel (%p270) target = $region32
      $region31: #{dc_generator_forward.6} parent=27 // pred_region
        %s273 = smul.u32 6, %s13
      $region32: #{dc_generator_forward.6} parent=27 // pred_fallthru
        _
    $region28: #{dc_generator_forward.6} parent=5 // pred_fallthru
      _
    %p274 = scmp.le.s32.totalorder 2, %s8
    // Predicated region
    $region33: #{dc_generator_forward.6} parent=5 // pred_check
      %p275 = pneg %p274
    $region34: #{dc_generator_forward.6} parent=5 // pred_check_branch
      %277 = sbr.rel (%p275) target = $region36
    $region35: #{dc_generator_forward.6} parent=5 // pred_region
      %s278 = ssub.s32 %s8, 2
      // Predicated region
      $region37: #{dc_generator_forward.6} parent=35 // pred_check
        %p279 = pneg %p84
      $region38: #{dc_generator_forward.6} parent=35 // pred_check_branch
        %281 = sbr.rel (%p279) target = $region40
      $region39: #{dc_generator_forward.6} parent=35 // pred_region
        %s282 = smul.u32 6, %s14
        %p283 = scmp.lt.s32.totalorder %s282, 23
        %s284 = scalar_select %p283, %s282, 23
        %s285 = smul.addr %s284, 8
        %s286 = scalar_lea.vmem %s2, %s285
      $region40: #{dc_generator_forward.6} parent=35 // pred_fallthru
        _
    $region36: #{dc_generator_forward.6} parent=5 // pred_fallthru
      _
  $region6: #{dc_generator_forward.6} parent=0 // loop_footer
    %s12 = sadd.s32 1, %s8
  $region7: #{dc_generator_forward.6} parent=0 // loop_footer_branch
    %7 = sbr.rel target = $region3
  $region8: #{dc_generator_forward.6} parent=0 // loop_exit
    _

// kernel: dc_generator_forward.7
$region0: #{dc_generator_forward.7}
  #allocation0 [shape = 'u32[]', space=smem, size = 0x4, offset = 0x4, fixed_abs, tag = 'smem constant byte address 0x4 - core index']
  #allocation1 [shape = 'u32[72,128]{1,0:T(1,128)}', space=vmem, size = 0x9000, scoped, tag = 'internal scratch']
  %s0 = inlined_call_operand.vmem [shape: bf16[640,64], index: 0, kind: input, shape index: {}]
  %s1 = inlined_call_operand.vmem [shape: bf16[64,128], index: 1, kind: input, shape index: {}]
  %s2 = inlined_call_operand.vmem [shape: f32[640,128], index: 2, kind: output, shape index: {}]
  %s3 = sld [smem:[#allocation0]]
  $region41: #{dc_generator_forward.7} parent=0
    _
  %s5 = ssub.s32 1, %s3
  %s6 = scalar_select 0, %s5, %s3
  loop: start=0, step=1, limit=6
  $region2: #{dc_generator_forward.7} parent=0 // loop_pre_header
    _
  $region3: #{dc_generator_forward.7} parent=0 // loop_header
    %s8 = sphi 0, %s12
    %p9 = scmp.ge.s32.totalorder %s8, 6
    %s18 = sphi 0, %s20
    %s21 = sphi 0, %s18
    %s22 = sphi 0, %s21
    %s38 = sphi 0, %s22
    %s42 = sphi 0, %s42
    %s44 = sphi 0, %s42
    %s45 = sphi 0, %s44
    %s59 = sphi 0, %s45
    %s65 = sphi 0, %s67
    %s68 = sphi 0, %s65
    %s69 = sphi 0, %s68
    %s85 = sphi 0, %s69
  $region4: #{dc_generator_forward.7} parent=0 // loop_header_branch
    %11 = sbr.rel (%p9) target = $region8
  $region5: #{dc_generator_forward.7} parent=0 // loop_body
    %s13 = ssub.s32 %s8, 1
    %s14 = ssub.s32 %s8, 2
    %s15 = sadd.s32 %s8, 1
    %s16 = ssub.s32 %s8, %s15
    %p17 = scmp.eq.s32.totalorder %s16, 0
    %s19 = sadd.s32 %s18, 1
    %s20 = scalar_select %p17, %s18, %s19
    %p23 = pneg %p17
    %p24 = scmp.eq.s32.totalorder %s8, 3
    %p25 = por %p23, %p24
    %p26 = scmp.ne.s32.totalorder %s18, %s21
    %p27 = scmp.eq.s32.totalorder %s8, 0
    %p28 = por %p26, %p27
    %p29 = scmp.ne.s32.totalorder %s18, %s21
    %p30 = scmp.eq.s32.totalorder %s13, 3
    %p31 = por %p29, %p30
    %p32 = scmp.ne.s32.totalorder %s21, %s22
    %p33 = scmp.eq.s32.totalorder %s13, 0
    %p34 = por %p32, %p33
    %p35 = scmp.ne.s32.totalorder %s21, %s22
    %p36 = scmp.eq.s32.totalorder %s14, 3
    %p37 = por %p35, %p36
    %p39 = scmp.ne.s32.totalorder %s22, %s38
    %p40 = scmp.eq.s32.totalorder %s14, 0
    %p41 = por %p39, %p40
    %s43 = sadd.s32 %s42, 1
    %p46 = scmp.eq.s32.totalorder %s8, 3
    %p47 = scmp.ne.s32.totalorder %s42, %s44
    %p48 = scmp.eq.s32.totalorder %s8, 0
    %p49 = por %p47, %p48
    %p50 = scmp.ne.s32.totalorder %s42, %s44
    %p51 = scmp.eq.s32.totalorder %s13, 3
    %p52 = por %p50, %p51
    %p53 = scmp.ne.s32.totalorder %s44, %s45
    %p54 = scmp.eq.s32.totalorder %s13, 0
    %p55 = por %p53, %p54
    %p56 = scmp.ne.s32.totalorder %s44, %s45
    %p57 = scmp.eq.s32.totalorder %s14, 3
    %p58 = por %p56, %p57
    %p60 = scmp.ne.s32.totalorder %s45, %s59
    %p61 = scmp.eq.s32.totalorder %s14, 0
    %p62 = por %p60, %p61
    %s63 = ssub.s32 %s8, %s15
    %p64 = scmp.eq.s32.totalorder %s63, 0
    %s66 = sadd.s32 %s65, 1
    %s67 = scalar_select %p64, %s65, %s66
    %p70 = pneg %p64
    %p71 = scmp.eq.s32.totalorder %s8, 3
    %p72 = por %p70, %p71
    %p73 = scmp.ne.s32.totalorder %s65, %s68
    %p74 = scmp.eq.s32.totalorder %s8, 0
    %p75 = por %p73, %p74
    %p76 = scmp.ne.s32.totalorder %s65, %s68
    %p77 = scmp.eq.s32.totalorder %s13, 3
    %p78 = por %p76, %p77
    %p79 = scmp.ne.s32.totalorder %s68, %s69
    %p80 = scmp.eq.s32.totalorder %s13, 0
    %p81 = por %p79, %p80
    %p82 = scmp.ne.s32.totalorder %s68, %s69
    %p83 = scmp.eq.s32.totalorder %s14, 3
    %p84 = por %p82, %p83
    %p86 = scmp.ne.s32.totalorder %s69, %s85
    %p87 = scmp.eq.s32.totalorder %s14, 0
    %p88 = por %p86, %p87
    %p89 = scmp.le.s32.totalorder 1, %s8
    %p90 = scmp.lt.s32.totalorder %s8, 5
    %p91 = pnand %p89, %p90
    %p92 = pneg %p91
    // Predicated region
    $region9: #{dc_generator_forward.7} parent=5 // pred_check
      _
    $region10: #{dc_generator_forward.7} parent=5 // pred_check_branch
      %94 = sbr.rel (%p91) target = $region12
    $region11: #{dc_generator_forward.7} parent=5 // pred_region
      %s95 = ssub.s32 %s8, 1
      // Predicated region
      $region13: #{dc_generator_forward.7} parent=11 // pred_check
        %p96 = pneg %p55
      $region14: #{dc_generator_forward.7} parent=11 // pred_check_branch
        %98 = sbr.rel (%p96) target = $region16
      $region15: #{dc_generator_forward.7} parent=11 // pred_region
        _
      $region16: #{dc_generator_forward.7} parent=11 // pred_fallthru
        _
    $region12: #{dc_generator_forward.7} parent=5 // pred_fallthru
      _
    %p99 = scmp.lt.s32.totalorder %s8, 4
    // Predicated region
    $region17: #{dc_generator_forward.7} parent=5 // pred_check
      %p100 = pneg %p99
    $region18: #{dc_generator_forward.7} parent=5 // pred_check_branch
      %102 = sbr.rel (%p100) target = $region20
    $region19: #{dc_generator_forward.7} parent=5 // pred_region
      // Predicated region
      $region21: #{dc_generator_forward.7} parent=19 // pred_check
        %p103 = pneg %p28
      $region22: #{dc_generator_forward.7} parent=19 // pred_check_branch
        %105 = sbr.rel (%p103) target = $region24
      $region23: #{dc_generator_forward.7} parent=19 // pred_region
        %s106 = smul.u32 20, %s8
        %p107 = scmp.lt.s32.totalorder %s106, 79
        %s108 = scalar_select %p107, %s106, 79
        %s109 = smul.addr %s108, 4
        %s110 = scalar_lea.vmem %s0, %s109
        %s111 = smul.u32 20, %s8
      $region24: #{dc_generator_forward.7} parent=19 // pred_fallthru
        _
    $region20: #{dc_generator_forward.7} parent=5 // pred_fallthru
      _
    %p112 = scmp.le.s32.totalorder 1, %s8
    %p113 = scmp.lt.s32.totalorder %s8, 5
    %p114 = pnand %p112, %p113
    %p115 = pneg %p114
    // Predicated region
    $region25: #{dc_generator_forward.7} parent=5 // pred_check
      _
    $region26: #{dc_generator_forward.7} parent=5 // pred_check_branch
      %117 = sbr.rel (%p114) target = $region28
    $region27: #{dc_generator_forward.7} parent=5 // pred_region
      %s118 = ssub.s32 %s8, 1
      %s119 = smul.u32 20, %s13
      %p120 = scmp.lt.s32.totalorder %s119, 79
      %s121 = scalar_select %p120, %s119, 79
      %s122 = smul.addr %s121, 4
      %s123 = scalar_lea.vmem %s0, %s122
      %p124 = pneg %p34
      %p125 = pneg %p31
      %p126 = pneg %p55
      %p127 = pneg %p52
      %p128 = pneg %p81
      %p129 = pneg %p78
      %s130 = smul.u32 20, %s13
      %p131 = scmp.lt.s32.totalorder %s130, 79
      %s132 = scalar_select %p131, %s130, 79
      %s133 = smul.addr %s132, 8
      %s134 = scalar_lea.vmem %s2, %s133
      %s135 = smul.u32 20, %s13
      %p136 = scmp.lt.s32.totalorder %s135, 79
      %s137 = scalar_select %p136, %s135, 79
      %s138 = smul.addr %s137, 4
      %s139 = scalar_lea.vmem %s0, %s138
      %s140 = smul.u32 20, %s13
      %s141 = smul.u32 20, %s13
      %p142 = scmp.lt.s32.totalorder %s141, 79
      %s143 = scalar_select %p142, %s141, 79
      %s144 = smul.addr %s143, 8
      %s145 = scalar_lea.vmem %s2, %s144
      %s146 = smul.u32 20, %s13
      %v148 = vld [vmem:[%s139] sm:$0xf]
      %v149 = vld [vmem:[%s139 + $0x4] sm:$0xf]
      %v150 = vld [vmem:[%s139 + $0x8] sm:$0xf]
      %v151 = vld [vmem:[%s139 + $0xc] sm:$0xf]
      %v152 = vld [vmem:[%s139 + $0x10] sm:$0xf]
      %v153 = vld [vmem:[%s139 + $0x14] sm:$0xf]
      %v154 = vld [vmem:[%s139 + $0x18] sm:$0xf]
      %v155 = vld [vmem:[%s139 + $0x1c] sm:$0xf]
      %v156 = vld [vmem:[%s139 + $0x20] sm:$0xf]
      %v157 = vld [vmem:[%s139 + $0x24] sm:$0xf]
      %v158 = vld [vmem:[%s139 + $0x28] sm:$0xf]
      %v159 = vld [vmem:[%s139 + $0x2c] sm:$0xf]
      %v160 = vld [vmem:[%s139 + $0x30] sm:$0xf]
      %v161 = vld [vmem:[%s139 + $0x34] sm:$0xf]
      %v162 = vld [vmem:[%s139 + $0x38] sm:$0xf]
      %v163 = vld [vmem:[%s139 + $0x3c] sm:$0xf]
      %v164 = vld [vmem:[%s139 + $0x40] sm:$0xf]
      %v165 = vld [vmem:[%s139 + $0x44] sm:$0xf]
      %v166 = vld [vmem:[%s139 + $0x48] sm:$0xf]
      %v167 = vld [vmem:[%s139 + $0x4c] sm:$0xf]
      %v168 = vld [vmem:[%s1] sm:$0xf]
      %v169 = vld [vmem:[%s1 + $0x4] sm:$0xf]
      %v170 = vld [vmem:[%s1 + $0x8] sm:$0xf]
      %v171 = vld [vmem:[%s1 + $0xc] sm:$0xf]
      %v172 = vld [vmem:[%s1 + $0x10] sm:$0xf]
      %v173 = vld [vmem:[%s1 + $0x14] sm:$0xf]
      %v174 = vld [vmem:[%s1 + $0x18] sm:$0xf]
      %v175 = vld [vmem:[%s1 + $0x1c] sm:$0xf]
      %v196 = vunpack.c.l.b16 %v148
      %v197 = vunpack.c.l.b16 %v149
      %v198 = vunpack.c.l.b16 %v150
      %v199 = vunpack.c.l.b16 %v151
      %v200 = vunpack.c.l.b16 %v152
      %v201 = vunpack.c.l.b16 %v153
      %v202 = vunpack.c.l.b16 %v154
      %v203 = vunpack.c.l.b16 %v155
      %v204 = vunpack.c.l.b16 %v156
      %v205 = vunpack.c.l.b16 %v157
      %v206 = vunpack.c.l.b16 %v158
      %v207 = vunpack.c.l.b16 %v159
      %v208 = vunpack.c.l.b16 %v160
      %v209 = vunpack.c.l.b16 %v161
      %v210 = vunpack.c.l.b16 %v162
      %v211 = vunpack.c.l.b16 %v163
      %v212 = vunpack.c.l.b16 %v164
      %v213 = vunpack.c.l.b16 %v165
      %v214 = vunpack.c.l.b16 %v166
      %v215 = vunpack.c.l.b16 %v167
      %v216 = vpack.c.b16 %v197, %v196
      %v217 = vpack.c.b16 %v199, %v198
      %v218 = vpack.c.b16 %v201, %v200
      %v219 = vpack.c.b16 %v203, %v202
      %v220 = vpack.c.b16 %v205, %v204
      %v221 = vpack.c.b16 %v207, %v206
      %v222 = vpack.c.b16 %v209, %v208
      %v223 = vpack.c.b16 %v211, %v210
      %v224 = vpack.c.b16 %v213, %v212
      %v225 = vpack.c.b16 %v215, %v214
      %v234 = vunpack.c.l.b16 %v168
      %v235 = vunpack.c.l.b16 %v169
      %v236 = vunpack.c.l.b16 %v170
      %v237 = vunpack.c.l.b16 %v171
      %v238 = vunpack.c.l.b16 %v172
      %v239 = vunpack.c.l.b16 %v173
      %v240 = vunpack.c.l.b16 %v174
      %v241 = vunpack.c.l.b16 %v175
      %v242 = vpack.c.b16 %v235, %v234
      %v243 = vpack.c.b16 %v237, %v236
      %v244 = vpack.c.b16 %v239, %v238
      %v245 = vpack.c.b16 %v241, %v240
      %vm250 = vcmask 523264
      %v252 = vsel %vm250, %v216, 0
      %v255 = vsel %vm250, %v217, 0
      %v258 = vsel %vm250, %v218, 0
      %v261 = vsel %vm250, %v219, 0
      %v264 = vsel %vm250, %v220, 0
      %v267 = vsel %vm250, %v221, 0
      %v270 = vsel %vm250, %v222, 0
      %v273 = vsel %vm250, %v223, 0
      %v276 = vsel %vm250, %v224, 0
      %v279 = vsel %vm250, %v225, 0
      %281 = vmatpush.bf16.msra.mxu0 0
      %282 = vmatpush.bf16.msra.mxu0 0
      %283 = vmatpush.bf16.msra.mxu0 0
      %284 = vmatpush.bf16.msra.mxu0 0
      %285 = vmatpush.bf16.msra.mxu0 %v245
      %286 = vmatpush.bf16.msra.mxu0 %v244
      %287 = vmatpush.bf16.msra.mxu0 %v243
      %288 = vmatpush.bf16.msra.mxu0 %v242
      %289 = vmatmul.bf16.gmra.mxu0 %v252
      %v290 = vpop.f32.mrf.mxu0
      %v291 = vadd.f32 0.0, %v290
      %v292 = vpop.f32.mrf.mxu0
      %v293 = vadd.f32 0.0, %v292
      %294 = vmatmul.bf16.gmra.mxu0 %v255
      %v295 = vpop.f32.mrf.mxu0
      %v296 = vadd.f32 0.0, %v295
      %v297 = vpop.f32.mrf.mxu0
      %v298 = vadd.f32 0.0, %v297
      %299 = vmatmul.bf16.gmra.mxu0 %v258
      %v300 = vpop.f32.mrf.mxu0
      %v301 = vadd.f32 0.0, %v300
      %v302 = vpop.f32.mrf.mxu0
      %v303 = vadd.f32 0.0, %v302
      %304 = vmatmul.bf16.gmra.mxu0 %v261
      %v305 = vpop.f32.mrf.mxu0
      %v306 = vadd.f32 0.0, %v305
      %v307 = vpop.f32.mrf.mxu0
      %v308 = vadd.f32 0.0, %v307
      %309 = vmatmul.bf16.gmra.mxu0 %v264
      %v310 = vpop.f32.mrf.mxu0
      %v311 = vadd.f32 0.0, %v310
      %v312 = vpop.f32.mrf.mxu0
      %v313 = vadd.f32 0.0, %v312
      %314 = vmatmul.bf16.gmra.mxu0 %v267
      %v315 = vpop.f32.mrf.mxu0
      %v316 = vadd.f32 0.0, %v315
      %v317 = vpop.f32.mrf.mxu0
      %v318 = vadd.f32 0.0, %v317
      %319 = vmatmul.bf16.gmra.mxu0 %v270
      %v320 = vpop.f32.mrf.mxu0
      %v321 = vadd.f32 0.0, %v320
      %v322 = vpop.f32.mrf.mxu0
      %v323 = vadd.f32 0.0, %v322
      %324 = vmatmul.bf16.gmra.mxu0 %v273
      %v325 = vpop.f32.mrf.mxu0
      %v326 = vadd.f32 0.0, %v325
      %v327 = vpop.f32.mrf.mxu0
      %v328 = vadd.f32 0.0, %v327
      %329 = vmatmul.bf16.gmra.mxu0 %v276
      %v330 = vpop.f32.mrf.mxu0
      %v331 = vadd.f32 0.0, %v330
      %v332 = vpop.f32.mrf.mxu0
      %v333 = vadd.f32 0.0, %v332
      %334 = vmatmul.bf16.gmra.mxu0 %v279
      %v335 = vpop.f32.mrf.mxu0
      %v336 = vadd.f32 0.0, %v335
      %v337 = vpop.f32.mrf.mxu0
      %v338 = vadd.f32 0.0, %v337
      %339 = vdwg.mxu0
      %340 = vst [vmem:[%s145] sm:$0xff] %v291
      %341 = vst [vmem:[%s145 + $0x8] sm:$0xff] %v293
      %342 = vst [vmem:[%s145 + $0x10] sm:$0xff] %v296
      %343 = vst [vmem:[%s145 + $0x18] sm:$0xff] %v298
      %344 = vst [vmem:[%s145 + $0x20] sm:$0xff] %v301
      %345 = vst [vmem:[%s145 + $0x28] sm:$0xff] %v303
      %346 = vst [vmem:[%s145 + $0x30] sm:$0xff] %v306
      %347 = vst [vmem:[%s145 + $0x38] sm:$0xff] %v308
      %348 = vst [vmem:[%s145 + $0x40] sm:$0xff] %v311
      %349 = vst [vmem:[%s145 + $0x48] sm:$0xff] %v313
      %350 = vst [vmem:[%s145 + $0x50] sm:$0xff] %v316
      %351 = vst [vmem:[%s145 + $0x58] sm:$0xff] %v318
      %352 = vst [vmem:[%s145 + $0x60] sm:$0xff] %v321
      %353 = vst [vmem:[%s145 + $0x68] sm:$0xff] %v323
      %354 = vst [vmem:[%s145 + $0x70] sm:$0xff] %v326
      %355 = vst [vmem:[%s145 + $0x78] sm:$0xff] %v328
      %356 = vst [vmem:[%s145 + $0x80] sm:$0xff] %v331
      %357 = vst [vmem:[%s145 + $0x88] sm:$0xff] %v333
      %358 = vst [vmem:[%s145 + $0x90] sm:$0xff] %v336
      %359 = vst [vmem:[%s145 + $0x98] sm:$0xff] %v338
      %s360 = smul.u32 20, %s13
      %p361 = scmp.lt.s32.totalorder %s360, 79
      %s362 = scalar_select %p361, %s360, 79
      %s363 = smul.addr %s362, 8
      %s364 = scalar_lea.vmem %s2, %s363
      // Predicated region
      $region29: #{dc_generator_forward.7} parent=27 // pred_check
        %p365 = pneg %p78
      $region30: #{dc_generator_forward.7} parent=27 // pred_check_branch
        %367 = sbr.rel (%p365) target = $region32
      $region31: #{dc_generator_forward.7} parent=27 // pred_region
        %s368 = smul.u32 20, %s13
      $region32: #{dc_generator_forward.7} parent=27 // pred_fallthru
        _
    $region28: #{dc_generator_forward.7} parent=5 // pred_fallthru
      _
    %p369 = scmp.le.s32.totalorder 2, %s8
    // Predicated region
    $region33: #{dc_generator_forward.7} parent=5 // pred_check
      %p370 = pneg %p369
    $region34: #{dc_generator_forward.7} parent=5 // pred_check_branch
      %372 = sbr.rel (%p370) target = $region36
    $region35: #{dc_generator_forward.7} parent=5 // pred_region
      %s373 = ssub.s32 %s8, 2
      // Predicated region
      $region37: #{dc_generator_forward.7} parent=35 // pred_check
        %p374 = pneg %p84
      $region38: #{dc_generator_forward.7} parent=35 // pred_check_branch
        %376 = sbr.rel (%p374) target = $region40
      $region39: #{dc_generator_forward.7} parent=35 // pred_region
        %s377 = smul.u32 20, %s14
        %p378 = scmp.lt.s32.totalorder %s377, 79
        %s379 = scalar_select %p378, %s377, 79
        %s380 = smul.addr %s379, 8
        %s381 = scalar_lea.vmem %s2, %s380
      $region40: #{dc_generator_forward.7} parent=35 // pred_fallthru
        _
    $region36: #{dc_generator_forward.7} parent=5 // pred_fallthru
      _
  $region6: #{dc_generator_forward.7} parent=0 // loop_footer
    %s12 = sadd.s32 1, %s8
  $region7: #{dc_generator_forward.7} parent=0 // loop_footer_branch
    %7 = sbr.rel target = $region3
  $region8: #{dc_generator_forward.7} parent=0 // loop_exit
    _

</llo_original>
